<compile_context>
chip_gen: v5e
topology: v5e:2x2
jax: 0.10.0
libtpu: 0.0.40
codegen_flags: <defaults>
</compile_context>

<pallas_src>
import functools
import math

import jax
import jax.numpy as jnp
from jax import lax
from jax.experimental import pallas as pl
from jax.experimental.pallas import tpu as pltpu

EMB_SIZE = 128
HEAD_SIZE = 256


def _self_attention_kernel(x_ref, wqkv_ref, bqkv_ref, o_ref, *, head_size,
                           block_kv):
    Bb, T, E = x_ref.shape
    H = head_size
    scale = 1.0 / math.sqrt(float(H))

    # Fused QKV projection: cast x to bf16 in-kernel (hidden under the MXU),
    # one (Bb*T, E) x (E, 3H) bf16 matmul with f32 accumulation.
    x2d = x_ref[...].astype(jnp.bfloat16).reshape(Bb * T, E)
    qkv = jnp.dot(x2d, wqkv_ref[...], preferred_element_type=jnp.float32)
    qkv = (qkv + bqkv_ref[...]).reshape(Bb, T, 3 * H)

    # H = 256 is lane-aligned, so these slices are free.  Fold the softmax
    # scale into q at the bf16 cast (touches T*H elements, not T*T).
    q = (qkv[:, :, 0 * H:1 * H] * scale).astype(jnp.bfloat16)   # (Bb, T, H)
    k = qkv[:, :, 1 * H:2 * H].astype(jnp.bfloat16)             # (Bb, T, H)
    v = qkv[:, :, 2 * H:3 * H].astype(jnp.bfloat16)             # (Bb, T, H)

    # 2-D causal-mask iotas; broadcast over batch happens inside jnp.where.
    q_pos = lax.broadcasted_iota(jnp.int32, (T, block_kv), 0)
    k_pos = lax.broadcasted_iota(jnp.int32, (T, block_kv), 1)

    def masked_scores(j0):
        k_blk = k[:, j0:j0 + block_kv, :]
        s = lax.dot_general(q, k_blk,
                            dimension_numbers=(((2,), (2,)), ((0,), (0,))),
                            preferred_element_type=jnp.float32)  # (Bb, T, kv)
        keep = (k_pos + j0) <= q_pos                             # (T, kv) bool
        # -inf is safe here: KV block 0 always contains key 0 <= every query
        # row, so the running max m is finite from the first block onwards.
        return jnp.where(keep[None, :, :], s, -jnp.inf)

    def pv(p, j0):
        v_blk = v[:, j0:j0 + block_kv, :]
        return lax.dot_general(p.astype(jnp.bfloat16), v_blk,
                               dimension_numbers=(((2,), (1,)), ((0,), (0,))),
                               preferred_element_type=jnp.float32)  # (Bb,T,H)

    # --- Online softmax over KV blocks: never materialize (Bb, T, T). ---
    s0 = masked_scores(0)
    m = jnp.max(s0, axis=-1, keepdims=True)                       # (Bb, T, 1)
    p0 = jnp.exp(s0 - m)
    l = jnp.sum(p0, axis=-1, keepdims=True)
    acc = pv(p0, 0)

    num_kv = T // block_kv
    for blk in range(1, num_kv):              # static unroll; num_kv is small
        j0 = blk * block_kv
        s_j = masked_scores(j0)
        m_new = jnp.maximum(m, jnp.max(s_j, axis=-1, keepdims=True))
        alpha = jnp.exp(m - m_new)
        p_j = jnp.exp(s_j - m_new)
        l = alpha * l + jnp.sum(p_j, axis=-1, keepdims=True)
        acc = alpha * acc + pv(p_j, j0)
        m = m_new

    # (dropout is identity in eval mode)

    # Exact reciprocal for the single final normalize (only (Bb, T, 1) elems).
    out = acc * (1.0 / l)
    o_ref[...] = out.astype(o_ref.dtype)


def _tpu_tiling_params():
    """Best-effort per-generation (n_tensorcores, vmem_budget_bytes, row_align)."""
    try:
        kind = jax.devices()[0].device_kind.lower()
    except Exception:
        kind = ""
    if "v7" in kind:
        return 2, 48 << 20, 256        # 64 MiB physical VMEM per TC, megacore
    if "v5 lite" in kind or "v5e" in kind or "v5litepod" in kind:
        return 1, 96 << 20, 128        # 128 MiB VMEM, 4x128x128 MXU
    return 1, 96 << 20, 256            # v6e-ish default: 128 MiB VMEM, 1 TC


def _vmem_estimate_bytes(bb, T, E, H, block_kv):
    rows = bb * T
    x_blk = rows * E * 4 * 2             # f32 input block, double-buffered
    o_blk = rows * H * 4 * 2             # f32 output block, double-buffered
    w = (E * 3 * H * 2 + 3 * H * 4) * 2  # resident fused weights/bias
    qkv = rows * 3 * H * (4 + 2)         # f32 projection + bf16 q/k/v copies
    scores = bb * T * block_kv * 4 * 3   # scores / exp / mask working set
    accum = rows * H * 4 * 2             # acc + rescaled-acc temporary
    return x_blk + o_blk + w + qkv + scores + accum


def _pick_block_kv(T):
    if T <= 512:
        return T
    for cand in (512, 256, 128):
        if T % cand == 0:
            return cand
    return T  # awkward T: fall back to materializing the full key axis


def _pick_block_b(B, T, E, H, block_kv, n_cores, vmem_budget):
    # ~512 MXU rows per grid step amortizes MXU fill/drain + per-step DMA.
    bb = max(1, min(512 // max(T, 1), B))
    # Keep >= n_cores grid steps only where megacore (v7x) actually shards.
    if n_cores > 1 and B >= n_cores:
        bb = min(bb, B // n_cores)
    # Respect the per-step VMEM budget.
    while bb > 1 and _vmem_estimate_bytes(bb, T, E, H, block_kv) > vmem_budget:
        bb -= 1
    # block_b must divide B (ragged tails not supported here).
    while B % bb != 0:
        bb -= 1
    return bb


def fuse_qkv_params(wq, wk, wv, bq, bk, bv):
    """One-time init: fuse QKV weights/biases. Do NOT call per forward pass."""
    w_qkv = jnp.concatenate([wq, wk, wv], axis=1).astype(jnp.bfloat16)  # (E,3H)
    b_qkv = jnp.concatenate([bq, bk, bv], axis=1).astype(jnp.float32)   # (1,3H)
    return w_qkv, b_qkv


@functools.partial(jax.jit, static_argnames=("block_b", "block_kv", "out_dtype"))
def self_attention(x, w_qkv, b_qkv, *, block_b=None, block_kv=None,
                   out_dtype=jnp.float32):
    B, T, E = x.shape
    H = w_qkv.shape[1] // 3

    n_cores, vmem_budget, _row_align = _tpu_tiling_params()
    if block_kv is None:
        block_kv = _pick_block_kv(T)
    if block_b is None:
        block_b = _pick_block_b(B, T, E, H, block_kv, n_cores, vmem_budget)

    kernel = functools.partial(_self_attention_kernel, head_size=H,
                               block_kv=block_kv)

    return pl.pallas_call(
        kernel,
        out_shape=jax.ShapeDtypeStruct((B, T, H), out_dtype),
        grid_spec=pltpu.PrefetchScalarGridSpec(
            num_scalar_prefetch=0,
            grid=(B // block_b,),
            in_specs=[
                pl.BlockSpec((block_b, T, E), lambda b: (b, 0, 0)),  # x (f32)
                pl.BlockSpec((E, 3 * H), lambda b: (0, 0)),          # W_qkv bf16
                pl.BlockSpec((1, 3 * H), lambda b: (0, 0)),          # b_qkv f32
            ],
            out_specs=pl.BlockSpec((block_b, T, H), lambda b: (b, 0, 0)),
        ),
        compiler_params=pltpu.CompilerParams(
            dimension_semantics=("parallel",),
            vmem_limit_bytes=int(vmem_budget)),
    )(x, w_qkv, b_qkv)


def _reference(x, wq, wk, wv, bq, bk, bv):
    q = x @ wq + bq
    k = x @ wk + bk
    v = x @ wv + bv
    H = q.shape[-1]
    wei = jnp.einsum("bth,bsh->bts", q, k) / jnp.sqrt(jnp.float32(H))
    T = q.shape[1]
    mask = jnp.tril(jnp.ones((T, T), jnp.bool_))
    wei = jnp.where(mask[None], wei, -jnp.inf)
    wei = jax.nn.softmax(wei, axis=-1)
    return jnp.einsum("bts,bsh->bth", wei, v)


if __name__ == "__main__":
    key = jax.random.PRNGKey(0)
    kx, kq, kk, kv_, kbq, kbk, kbv, kx2 = jax.random.split(key, 8)

    B, E, H = 2, EMB_SIZE, HEAD_SIZE
    # nn.Linear-style init (uniform in +-1/sqrt(fan_in)), deterministic.
    bound = 1.0 / math.sqrt(E)
    wq = jax.random.uniform(kq, (E, H), jnp.float32, -bound, bound)
    wk = jax.random.uniform(kk, (E, H), jnp.float32, -bound, bound)
    wv = jax.random.uniform(kv_, (E, H), jnp.float32, -bound, bound)
    bq = jax.random.uniform(kbq, (1, H), jnp.float32, -bound, bound)
    bk = jax.random.uniform(kbk, (1, H), jnp.float32, -bound, bound)
    bv = jax.random.uniform(kbv, (1, H), jnp.float32, -bound, bound)

    # One-time fusion (hoisted out of the per-call path).
    w_qkv, b_qkv = fuse_qkv_params(wq, wk, wv, bq, bk, bv)
    w_qkv.block_until_ready()
    b_qkv.block_until_ready()

    # --- Test 1: module-spec small shape (B=2, T=8); single KV block. ---
    T = 8
    x = jax.random.normal(kx, (B, T, E), jnp.float32)
    out = self_attention(x, w_qkv, b_qkv)
    out = jax.block_until_ready(out)
    ref = _reference(x, wq, wk, wv, bq, bk, bv)
    assert out.shape == (B, T, H)
    # bf16 MXU operands -> relaxed tolerance vs the f32 reference.
    assert jnp.allclose(out, ref, atol=3e-2, rtol=3e-2), "mismatch (T=8)"

    # --- Test 2: exercise the online-softmax KV loop (two KV blocks). ---
    T2 = 128
    x2 = jax.random.normal(kx2, (B, T2, E), jnp.float32)
    out2 = self_attention(x2, w_qkv, b_qkv, block_kv=64)
    out2 = jax.block_until_ready(out2)
    ref2 = _reference(x2, wq, wk, wv, bq, bk, bv)
    assert jnp.allclose(out2, ref2, atol=3e-2, rtol=3e-2), "mismatch (T=128)"

    print("KERNEL_OK")
</pallas_src>

<mosaic_0001>
module attributes {stable_mosaic.version = 11 : i64} {
  func.func @_self_attention_kernel(%arg0: i32, %arg1: memref<2x8x128xf32, #tpu.memory_space<vmem>>, %arg2: memref<128x768xbf16, #tpu.memory_space<vmem>>, %arg3: memref<1x768xf32, #tpu.memory_space<vmem>>, %arg4: memref<2x8x256xf32, #tpu.memory_space<vmem>>) attributes {dimension_semantics = [#tpu.dimension_semantics<parallel>], iteration_bounds = array<i64: 1>, scalar_prefetch = 0 : i64, scratch_operands = 0 : i64, tpu.core_type = #tpu.core_type<tc>, window_params = [{transform_indices = @transform_0, window_bounds = array<i64: 2, 8, 128>}, {pipeline_mode = #tpu.pipeline_mode<synchronous>, transform_indices = @transform_1, window_bounds = array<i64: 128, 768>}, {pipeline_mode = #tpu.pipeline_mode<synchronous>, transform_indices = @transform_2, window_bounds = array<i64: 1, 768>}, {transform_indices = @transform_3, window_bounds = array<i64: 2, 8, 256>}]} {
    %c0 = arith.constant 0 : index
    %c0_0 = arith.constant 0 : index
    %c0_1 = arith.constant 0 : index
    %0 = vector.load %arg1[%c0, %c0_0, %c0_1] : memref<2x8x128xf32, #tpu.memory_space<vmem>>, vector<2x8x128xf32>
    %1 = arith.truncf %0 : vector<2x8x128xf32> to vector<2x8x128xbf16>
    %2 = vector.shape_cast %1 : vector<2x8x128xbf16> to vector<16x128xbf16>
    %c0_2 = arith.constant 0 : index
    %c0_3 = arith.constant 0 : index
    %3 = vector.load %arg2[%c0_2, %c0_3] : memref<128x768xbf16, #tpu.memory_space<vmem>>, vector<128x768xbf16>
    %cst = arith.constant dense<0.000000e+00> : vector<16x768xf32>
    %4 = tpu.matmul %2, %3, %cst {dimension_numbers = #tpu.dot_dimension_numbers<[1], [0], [0], [1], [0, 0, 1, 1], [], []>} : vector<16x128xbf16>, vector<128x768xbf16>, vector<16x768xf32> -> vector<16x768xf32>
    %c0_4 = arith.constant 0 : index
    %c0_5 = arith.constant 0 : index
    %5 = vector.load %arg3[%c0_4, %c0_5] : memref<1x768xf32, #tpu.memory_space<vmem>>, vector<1x768xf32>
    %6 = vector.broadcast %5 : vector<1x768xf32> to vector<16x768xf32>
    %7 = arith.addf %4, %6 : vector<16x768xf32>
    %8 = vector.shape_cast %7 : vector<16x768xf32> to vector<2x8x768xf32>
    %9 = vector.extract_strided_slice %8 {offsets = [0, 0, 0], sizes = [2, 8, 256], strides = [1, 1, 1]} : vector<2x8x768xf32> to vector<2x8x256xf32>
    %cst_6 = arith.constant 6.250000e-02 : f32
    %10 = vector.broadcast %cst_6 : f32 to vector<2x8x256xf32>
    %11 = arith.mulf %9, %10 : vector<2x8x256xf32>
    %12 = arith.truncf %11 : vector<2x8x256xf32> to vector<2x8x256xbf16>
    %13 = vector.extract_strided_slice %8 {offsets = [0, 0, 256], sizes = [2, 8, 256], strides = [1, 1, 1]} : vector<2x8x768xf32> to vector<2x8x256xf32>
    %14 = arith.truncf %13 : vector<2x8x256xf32> to vector<2x8x256xbf16>
    %15 = vector.extract_strided_slice %8 {offsets = [0, 0, 512], sizes = [2, 8, 256], strides = [1, 1, 1]} : vector<2x8x768xf32> to vector<2x8x256xf32>
    %16 = arith.truncf %15 : vector<2x8x256xf32> to vector<2x8x256xbf16>
    %17 = tpu.iota {dimensions = array<i32: 0>} : vector<8x8xi32>
    %18 = tpu.iota {dimensions = array<i32: 1>} : vector<8x8xi32>
    %cst_7 = arith.constant dense<0.000000e+00> : vector<2x8x8xf32>
    %19 = tpu.matmul %12, %14, %cst_7 {dimension_numbers = #tpu.dot_dimension_numbers<[2], [2], [1], [1], [0, 0, 0, 1, 1, 1], [0], [0]>} : vector<2x8x256xbf16>, vector<2x8x256xbf16>, vector<2x8x8xf32> -> vector<2x8x8xf32>
    %c0_i32 = arith.constant 0 : i32
    %20 = vector.broadcast %c0_i32 : i32 to vector<8x8xi32>
    %21 = arith.addi %18, %20 : vector<8x8xi32>
    %22 = arith.cmpi sle, %21, %17 : vector<8x8xi32>
    %23 = vector.shape_cast %22 : vector<8x8xi1> to vector<1x8x8xi1>
    %cst_8 = arith.constant 0xFF800000 : f32
    %24 = vector.shape_cast %23 : vector<1x8x8xi1> to vector<1x8x8xi1>
    %25 = vector.broadcast %24 : vector<1x8x8xi1> to vector<2x8x8xi1>
    %26 = vector.broadcast %cst_8 : f32 to vector<2x8x8xf32>
    %27 = arith.select %25, %19, %26 : vector<2x8x8xi1>, vector<2x8x8xf32>
    %cst_9 = arith.constant dense<0xFF800000> : vector<2x8xf32>
    %28 = vector.multi_reduction <maximumf>, %27, %cst_9 [2] : vector<2x8x8xf32> to vector<2x8xf32>
    %29 = vector.shape_cast %28 : vector<2x8xf32> to vector<2x8x1xf32>
    %30 = vector.broadcast %29 : vector<2x8x1xf32> to vector<2x8x8xf32>
    %31 = arith.subf %27, %30 : vector<2x8x8xf32>
    %32 = math.exp %31 : vector<2x8x8xf32>
    %cst_10 = arith.constant dense<0.000000e+00> : vector<2x8xf32>
    %33 = vector.multi_reduction <add>, %32, %cst_10 [2] : vector<2x8x8xf32> to vector<2x8xf32>
    %34 = vector.shape_cast %33 : vector<2x8xf32> to vector<2x8x1xf32>
    %35 = arith.truncf %32 : vector<2x8x8xf32> to vector<2x8x8xbf16>
    %cst_11 = arith.constant dense<0.000000e+00> : vector<2x8x256xf32>
    %36 = tpu.matmul %35, %16, %cst_11 {dimension_numbers = #tpu.dot_dimension_numbers<[2], [1], [1], [2], [0, 0, 0, 1, 1, 2], [0], [0]>} : vector<2x8x8xbf16>, vector<2x8x256xbf16>, vector<2x8x256xf32> -> vector<2x8x256xf32>
    %cst_12 = arith.constant 1.000000e+00 : f32
    %37 = vector.broadcast %cst_12 : f32 to vector<2x8x1xf32>
    %38 = arith.divf %37, %34 : vector<2x8x1xf32>
    %39 = vector.broadcast %38 : vector<2x8x1xf32> to vector<2x8x256xf32>
    %40 = arith.mulf %36, %39 : vector<2x8x256xf32>
    %c0_13 = arith.constant 0 : index
    %c0_14 = arith.constant 0 : index
    %c0_15 = arith.constant 0 : index
    %41 = vector.load %arg4[%c0_13, %c0_14, %c0_15] : memref<2x8x256xf32, #tpu.memory_space<vmem>>, vector<2x8x256xf32>
    tpu.vector_store %arg4[%c0_13, %c0_14, %c0_15], %40 {strides = array<i32>} : memref<2x8x256xf32, #tpu.memory_space<vmem>>, vector<2x8x256xf32>,
    return
  }
  func.func @transform_0(%arg0: i32) -> (i32, i32, i32) {
    %c0_i32 = arith.constant 0 : i32
    %c0_i32_0 = arith.constant 0 : i32
    %c0_i32_1 = arith.constant 0 : i32
    return %arg0, %c0_i32, %c0_i32_0 : i32, i32, i32
  }
  func.func @transform_1(%arg0: i32) -> (i32, i32) {
    %c0_i32 = arith.constant 0 : i32
    %c0_i32_0 = arith.constant 0 : i32
    %c0_i32_1 = arith.constant 0 : i32
    return %c0_i32, %c0_i32_0 : i32, i32
  }
  func.func @transform_2(%arg0: i32) -> (i32, i32) {
    %c0_i32 = arith.constant 0 : i32
    %c0_i32_0 = arith.constant 0 : i32
    %c0_i32_1 = arith.constant 0 : i32
    return %c0_i32, %c0_i32_0 : i32, i32
  }
  func.func @transform_3(%arg0: i32) -> (i32, i32, i32) {
    %c0_i32 = arith.constant 0 : i32
    %c0_i32_0 = arith.constant 0 : i32
    %c0_i32_1 = arith.constant 0 : i32
    return %arg0, %c0_i32, %c0_i32_0 : i32, i32, i32
  }
}

</mosaic_0001>

<llo_original>
// kernel: self_attention.1
$region0: #{self_attention.1}
  #allocation0 [shape = 'u32[]', space=smem, size = 0x4, offset = 0x4, fixed_abs, tag = 'smem constant byte address 0x4 - core index']
  #allocation1 [shape = 'u32[72,128]{1,0:T(1,128)}', space=vmem, size = 0x9000, scoped, tag = 'internal scratch']
  %s0 = inlined_call_operand.hbm [shape: f32[2,8,128], index: 0, kind: input, shape index: {}]
  %s1 = inlined_call_operand.hbm [shape: bf16[128,768], index: 1, kind: input, shape index: {}]
  %s2 = inlined_call_operand.hbm [shape: f32[1,768], index: 2, kind: input, shape index: {}]
  %s3 = inlined_call_operand.hbm [shape: f32[2,8,256], index: 3, kind: output, shape index: {}]
  %s4 = sld [smem:[#allocation0]]
  $region34: #{self_attention.1} parent=0
    _
  %s6 = ssub.s32 1, %s4
  %s7 = scalar_select 0, %s6, %s4
  $region1: #{self_attention.1} parent=0
    #allocation2 [shape = 'u8[8192]{0}', space=vmem, size = 0x2000, scoped, tag = 'input window, operand 0, single buffered']
    #allocation3 [shape = 's32[1]{0}', space=sflag, size = 0x4, scoped, tag = 'scoped memory for self_attention.1']
    #allocation4 [shape = 's32[1]{0}', space=sflag, size = 0x4, scoped, tag = 'scoped memory for self_attention.1']
    #allocation5 [shape = 'u8[196608]{0}', space=vmem, size = 0x30000, scoped, tag = 'input window, operand 1, single buffered']
    #allocation6 [shape = 's32[1]{0}', space=sflag, size = 0x4, scoped, tag = 'scoped memory for self_attention.1']
    #allocation7 [shape = 'u8[3072]{0}', space=vmem, size = 0xc00, scoped, tag = 'input window, operand 2, single buffered']
    #allocation8 [shape = 'u8[16384]{0}', space=vmem, size = 0x4000, scoped, tag = 'output window, operand 0, single buffered']
    %8 = vsyncpa [#allocation3], 0
    %9 = vsyncpa [#allocation6], 0
    %10 = vsyncpa [#allocation4], 0
    // Predicated region
    $region2: #{self_attention.1} parent=1 // pred_check
      _
    $region3: #{self_attention.1} parent=1 // pred_check_branch
      %12 = sbr.rel (0) target = $region5
    $region4: #{self_attention.1} parent=1 // pred_region
      %14 = vsyncadd [#allocation3], 0
      %s15 = sshll.u32 %s0, 4
      %s16 = int_to_ptr.hbm [resolvable:$true] %s15
      %s17 = sshll.u32 [#allocation2], 4
      %s18 = int_to_ptr.vmem [resolvable:$true] %s17
      %23 = dma.hbm_to_vmem [thread:$0]  %s16, 256, %s18, [#allocation3], 128, 128, 8
    $region5: #{self_attention.1} parent=1 // pred_fallthru
      _
    // Predicated region
    $region6: #{self_attention.1} parent=1 // pred_check
      _
    $region7: #{self_attention.1} parent=1 // pred_check_branch
      %25 = sbr.rel (0) target = $region9
    $region8: #{self_attention.1} parent=1 // pred_region
      %27 = vsyncadd [#allocation6], 0
      %s28 = sshll.u32 %s1, 4
      %s29 = int_to_ptr.hbm [resolvable:$true] %s28
      %s30 = sshll.u32 [#allocation5], 4
      %s31 = int_to_ptr.vmem [resolvable:$true] %s30
      %36 = dma.hbm_to_vmem [thread:$0]  %s29, 6144, %s31, [#allocation6], 384, 384, 24
    $region9: #{self_attention.1} parent=1 // pred_fallthru
      _
    // Predicated region
    $region10: #{self_attention.1} parent=1 // pred_check
      _
    $region11: #{self_attention.1} parent=1 // pred_check_branch
      %38 = sbr.rel (0) target = $region13
    $region12: #{self_attention.1} parent=1 // pred_region
      %40 = vsyncadd [#allocation6], 0
      %s42 = sshll.u32 %s2, 4
      %s43 = int_to_ptr.hbm [resolvable:$true] %s42
      %s44 = sshll.u32 [#allocation7], 4
      %s45 = int_to_ptr.vmem [resolvable:$true] %s44
      %47 = dma.hbm_to_vmem [thread:$0]  %s43, 96, %s45, [#allocation6]
    $region13: #{self_attention.1} parent=1 // pred_fallthru
      _
    // Predicated region
    $region14: #{self_attention.1} parent=1 // pred_check
      _
    $region15: #{self_attention.1} parent=1 // pred_check_branch
      %49 = sbr.rel (0) target = $region17
    $region16: #{self_attention.1} parent=1 // pred_region
      %51 = dma.done [#allocation3], 256
    $region17: #{self_attention.1} parent=1 // pred_fallthru
      _
    // Predicated region
    $region18: #{self_attention.1} parent=1 // pred_check
      _
    $region19: #{self_attention.1} parent=1 // pred_check_branch
      %53 = sbr.rel (0) target = $region21
    $region20: #{self_attention.1} parent=1 // pred_region
      %55 = dma.done [#allocation6], 6144
    $region21: #{self_attention.1} parent=1 // pred_fallthru
      _
    // Predicated region
    $region22: #{self_attention.1} parent=1 // pred_check
      _
    $region23: #{self_attention.1} parent=1 // pred_check_branch
      %57 = sbr.rel (0) target = $region25
    $region24: #{self_attention.1} parent=1 // pred_region
      %59 = dma.done [#allocation6], 96
    $region25: #{self_attention.1} parent=1 // pred_fallthru
      _
    %v61 = vld [vmem:[#allocation2] sm:$0xff]
    %v62 = vld [vmem:[#allocation2 + $0x8] sm:$0xff]
    %v63 = vpack.c.bf16 %v61, %v61
    %v64 = vpack.c.bf16 %v62, %v62
    %v65 = vld [vmem:[#allocation5] sm:$0xff]
    %v66 = vld [vmem:[#allocation5 + $0x8] sm:$0xff]
    %v67 = vld [vmem:[#allocation5 + $0x10] sm:$0xff]
    %v68 = vld [vmem:[#allocation5 + $0x18] sm:$0xff]
    %v69 = vld [vmem:[#allocation5 + $0x20] sm:$0xff]
    %v70 = vld [vmem:[#allocation5 + $0x28] sm:$0xff]
    %v71 = vld [vmem:[#allocation5 + $0x30] sm:$0xff]
    %v72 = vld [vmem:[#allocation5 + $0x38] sm:$0xff]
    %v73 = vld [vmem:[#allocation5 + $0x40] sm:$0xff]
    %v74 = vld [vmem:[#allocation5 + $0x48] sm:$0xff]
    %v75 = vld [vmem:[#allocation5 + $0x50] sm:$0xff]
    %v76 = vld [vmem:[#allocation5 + $0x58] sm:$0xff]
    %v77 = vld [vmem:[#allocation5 + $0x60] sm:$0xff]
    %v78 = vld [vmem:[#allocation5 + $0x68] sm:$0xff]
    %v79 = vld [vmem:[#allocation5 + $0x70] sm:$0xff]
    %v80 = vld [vmem:[#allocation5 + $0x78] sm:$0xff]
    %v81 = vld [vmem:[#allocation5 + $0x80] sm:$0xff]
    %v82 = vld [vmem:[#allocation5 + $0x88] sm:$0xff]
    %v83 = vld [vmem:[#allocation5 + $0x90] sm:$0xff]
    %v84 = vld [vmem:[#allocation5 + $0x98] sm:$0xff]
    %v85 = vld [vmem:[#allocation5 + $0xa0] sm:$0xff]
    %v86 = vld [vmem:[#allocation5 + $0xa8] sm:$0xff]
    %v87 = vld [vmem:[#allocation5 + $0xb0] sm:$0xff]
    %v88 = vld [vmem:[#allocation5 + $0xb8] sm:$0xff]
    %v89 = vld [vmem:[#allocation5 + $0xc0] sm:$0xff]
    %v90 = vld [vmem:[#allocation5 + $0xc8] sm:$0xff]
    %v91 = vld [vmem:[#allocation5 + $0xd0] sm:$0xff]
    %v92 = vld [vmem:[#allocation5 + $0xd8] sm:$0xff]
    %v93 = vld [vmem:[#allocation5 + $0xe0] sm:$0xff]
    %v94 = vld [vmem:[#allocation5 + $0xe8] sm:$0xff]
    %v95 = vld [vmem:[#allocation5 + $0xf0] sm:$0xff]
    %v96 = vld [vmem:[#allocation5 + $0xf8] sm:$0xff]
    %v97 = vld [vmem:[#allocation5 + $0x100] sm:$0xff]
    %v98 = vld [vmem:[#allocation5 + $0x108] sm:$0xff]
    %v99 = vld [vmem:[#allocation5 + $0x110] sm:$0xff]
    %v100 = vld [vmem:[#allocation5 + $0x118] sm:$0xff]
    %v101 = vld [vmem:[#allocation5 + $0x120] sm:$0xff]
    %v102 = vld [vmem:[#allocation5 + $0x128] sm:$0xff]
    %v103 = vld [vmem:[#allocation5 + $0x130] sm:$0xff]
    %v104 = vld [vmem:[#allocation5 + $0x138] sm:$0xff]
    %v105 = vld [vmem:[#allocation5 + $0x140] sm:$0xff]
    %v106 = vld [vmem:[#allocation5 + $0x148] sm:$0xff]
    %v107 = vld [vmem:[#allocation5 + $0x150] sm:$0xff]
    %v108 = vld [vmem:[#allocation5 + $0x158] sm:$0xff]
    %v109 = vld [vmem:[#allocation5 + $0x160] sm:$0xff]
    %v110 = vld [vmem:[#allocation5 + $0x168] sm:$0xff]
    %v111 = vld [vmem:[#allocation5 + $0x170] sm:$0xff]
    %v112 = vld [vmem:[#allocation5 + $0x178] sm:$0xff]
    %v113 = vld [vmem:[#allocation7] sm:$0x3f]
    %v115 = vperm.slane %v113, 0
    %v116 = vperm.slane %v113, 1
    %v117 = vperm.slane %v113, 2
    %v118 = vperm.slane %v113, 3
    %v119 = vperm.slane %v113, 4
    %v120 = vperm.slane %v113, 5
    %v129 = vunpack.c.l.b16 %v63
    %v130 = vunpack.c.l.b16 %v64
    %v131 = vpack.c.b16 %v130, %v129
    %v181 = vunpack.c.l.b16 %v65
    %v182 = vunpack.c.h.b16 %v65
    %v183 = vunpack.c.l.b16 %v66
    %v184 = vunpack.c.h.b16 %v66
    %v185 = vunpack.c.l.b16 %v67
    %v186 = vunpack.c.h.b16 %v67
    %v187 = vunpack.c.l.b16 %v68
    %v188 = vunpack.c.h.b16 %v68
    %v189 = vunpack.c.l.b16 %v69
    %v190 = vunpack.c.h.b16 %v69
    %v191 = vunpack.c.l.b16 %v70
    %v192 = vunpack.c.h.b16 %v70
    %v193 = vunpack.c.l.b16 %v71
    %v194 = vunpack.c.h.b16 %v71
    %v195 = vunpack.c.l.b16 %v72
    %v196 = vunpack.c.h.b16 %v72
    %v197 = vunpack.c.l.b16 %v73
    %v198 = vunpack.c.h.b16 %v73
    %v199 = vunpack.c.l.b16 %v74
    %v200 = vunpack.c.h.b16 %v74
    %v201 = vunpack.c.l.b16 %v75
    %v202 = vunpack.c.h.b16 %v75
    %v203 = vunpack.c.l.b16 %v76
    %v204 = vunpack.c.h.b16 %v76
    %v205 = vunpack.c.l.b16 %v77
    %v206 = vunpack.c.h.b16 %v77
    %v207 = vunpack.c.l.b16 %v78
    %v208 = vunpack.c.h.b16 %v78
    %v209 = vunpack.c.l.b16 %v79
    %v210 = vunpack.c.h.b16 %v79
    %v211 = vunpack.c.l.b16 %v80
    %v212 = vunpack.c.h.b16 %v80
    %v213 = vunpack.c.l.b16 %v81
    %v214 = vunpack.c.h.b16 %v81
    %v215 = vunpack.c.l.b16 %v82
    %v216 = vunpack.c.h.b16 %v82
    %v217 = vunpack.c.l.b16 %v83
    %v218 = vunpack.c.h.b16 %v83
    %v219 = vunpack.c.l.b16 %v84
    %v220 = vunpack.c.h.b16 %v84
    %v221 = vunpack.c.l.b16 %v85
    %v222 = vunpack.c.h.b16 %v85
    %v223 = vunpack.c.l.b16 %v86
    %v224 = vunpack.c.h.b16 %v86
    %v225 = vunpack.c.l.b16 %v87
    %v226 = vunpack.c.h.b16 %v87
    %v227 = vunpack.c.l.b16 %v88
    %v228 = vunpack.c.h.b16 %v88
    %v229 = vunpack.c.l.b16 %v89
    %v230 = vunpack.c.h.b16 %v89
    %v231 = vunpack.c.l.b16 %v90
    %v232 = vunpack.c.h.b16 %v90
    %v233 = vunpack.c.l.b16 %v91
    %v234 = vunpack.c.h.b16 %v91
    %v235 = vunpack.c.l.b16 %v92
    %v236 = vunpack.c.h.b16 %v92
    %v237 = vunpack.c.l.b16 %v93
    %v238 = vunpack.c.h.b16 %v93
    %v239 = vunpack.c.l.b16 %v94
    %v240 = vunpack.c.h.b16 %v94
    %v241 = vunpack.c.l.b16 %v95
    %v242 = vunpack.c.h.b16 %v95
    %v243 = vunpack.c.l.b16 %v96
    %v244 = vunpack.c.h.b16 %v96
    %v245 = vunpack.c.l.b16 %v97
    %v246 = vunpack.c.h.b16 %v97
    %v247 = vunpack.c.l.b16 %v98
    %v248 = vunpack.c.h.b16 %v98
    %v249 = vunpack.c.l.b16 %v99
    %v250 = vunpack.c.h.b16 %v99
    %v251 = vunpack.c.l.b16 %v100
    %v252 = vunpack.c.h.b16 %v100
    %v253 = vunpack.c.l.b16 %v101
    %v254 = vunpack.c.h.b16 %v101
    %v255 = vunpack.c.l.b16 %v102
    %v256 = vunpack.c.h.b16 %v102
    %v257 = vunpack.c.l.b16 %v103
    %v258 = vunpack.c.h.b16 %v103
    %v259 = vunpack.c.l.b16 %v104
    %v260 = vunpack.c.h.b16 %v104
    %v261 = vunpack.c.l.b16 %v105
    %v262 = vunpack.c.h.b16 %v105
    %v263 = vunpack.c.l.b16 %v106
    %v264 = vunpack.c.h.b16 %v106
    %v265 = vunpack.c.l.b16 %v107
    %v266 = vunpack.c.h.b16 %v107
    %v267 = vunpack.c.l.b16 %v108
    %v268 = vunpack.c.h.b16 %v108
    %v269 = vunpack.c.l.b16 %v109
    %v270 = vunpack.c.h.b16 %v109
    %v271 = vunpack.c.l.b16 %v110
    %v272 = vunpack.c.h.b16 %v110
    %v273 = vunpack.c.l.b16 %v111
    %v274 = vunpack.c.h.b16 %v111
    %v275 = vunpack.c.l.b16 %v112
    %v276 = vunpack.c.h.b16 %v112
    %v277 = vpack.c.b16 %v187, %v181
    %v278 = vpack.c.b16 %v188, %v182
    %v279 = vpack.c.b16 %v189, %v183
    %v280 = vpack.c.b16 %v190, %v184
    %v281 = vpack.c.b16 %v191, %v185
    %v282 = vpack.c.b16 %v192, %v186
    %v283 = vpack.c.b16 %v199, %v193
    %v284 = vpack.c.b16 %v200, %v194
    %v285 = vpack.c.b16 %v201, %v195
    %v286 = vpack.c.b16 %v202, %v196
    %v287 = vpack.c.b16 %v203, %v197
    %v288 = vpack.c.b16 %v204, %v198
    %v289 = vpack.c.b16 %v211, %v205
    %v290 = vpack.c.b16 %v212, %v206
    %v291 = vpack.c.b16 %v213, %v207
    %v292 = vpack.c.b16 %v214, %v208
    %v293 = vpack.c.b16 %v215, %v209
    %v294 = vpack.c.b16 %v216, %v210
    %v295 = vpack.c.b16 %v223, %v217
    %v296 = vpack.c.b16 %v224, %v218
    %v297 = vpack.c.b16 %v225, %v219
    %v298 = vpack.c.b16 %v226, %v220
    %v299 = vpack.c.b16 %v227, %v221
    %v300 = vpack.c.b16 %v228, %v222
    %v301 = vpack.c.b16 %v235, %v229
    %v302 = vpack.c.b16 %v236, %v230
    %v303 = vpack.c.b16 %v237, %v231
    %v304 = vpack.c.b16 %v238, %v232
    %v305 = vpack.c.b16 %v239, %v233
    %v306 = vpack.c.b16 %v240, %v234
    %v307 = vpack.c.b16 %v247, %v241
    %v308 = vpack.c.b16 %v248, %v242
    %v309 = vpack.c.b16 %v249, %v243
    %v310 = vpack.c.b16 %v250, %v244
    %v311 = vpack.c.b16 %v251, %v245
    %v312 = vpack.c.b16 %v252, %v246
    %v313 = vpack.c.b16 %v259, %v253
    %v314 = vpack.c.b16 %v260, %v254
    %v315 = vpack.c.b16 %v261, %v255
    %v316 = vpack.c.b16 %v262, %v256
    %v317 = vpack.c.b16 %v263, %v257
    %v318 = vpack.c.b16 %v264, %v258
    %v319 = vpack.c.b16 %v271, %v265
    %v320 = vpack.c.b16 %v272, %v266
    %v321 = vpack.c.b16 %v273, %v267
    %v322 = vpack.c.b16 %v274, %v268
    %v323 = vpack.c.b16 %v275, %v269
    %v324 = vpack.c.b16 %v276, %v270
    %373 = vmatpush.bf16.msra.mxu0 %v319
    %374 = vmatpush.bf16.msra.mxu0 %v313
    %375 = vmatpush.bf16.msra.mxu0 %v307
    %376 = vmatpush.bf16.msra.mxu0 %v301
    %377 = vmatpush.bf16.msra.mxu0 %v295
    %378 = vmatpush.bf16.msra.mxu0 %v289
    %379 = vmatpush.bf16.msra.mxu0 %v283
    %380 = vmatpush.bf16.msra.mxu0 %v277
    %381 = vmatmul.bf16.gmra.mxu0 %v131
    %v382 = vpop.f32.mrf.mxu0
    %v383 = vadd.f32 %v115, %v382
    %v384 = vpop.f32.mrf.mxu0
    %v385 = vadd.f32 %v115, %v384
    %386 = vdwg.mxu0
    %387 = vmatpush.bf16.msra.mxu0 %v320
    %388 = vmatpush.bf16.msra.mxu0 %v314
    %389 = vmatpush.bf16.msra.mxu0 %v308
    %390 = vmatpush.bf16.msra.mxu0 %v302
    %391 = vmatpush.bf16.msra.mxu0 %v296
    %392 = vmatpush.bf16.msra.mxu0 %v290
    %393 = vmatpush.bf16.msra.mxu0 %v284
    %394 = vmatpush.bf16.msra.mxu0 %v278
    %395 = vmatmul.bf16.gmra.mxu0 %v131
    %v396 = vpop.f32.mrf.mxu0
    %v397 = vadd.f32 %v116, %v396
    %v398 = vpop.f32.mrf.mxu0
    %v399 = vadd.f32 %v116, %v398
    %400 = vdwg.mxu0
    %401 = vmatpush.bf16.msra.mxu0 %v321
    %402 = vmatpush.bf16.msra.mxu0 %v315
    %403 = vmatpush.bf16.msra.mxu0 %v309
    %404 = vmatpush.bf16.msra.mxu0 %v303
    %405 = vmatpush.bf16.msra.mxu0 %v297
    %406 = vmatpush.bf16.msra.mxu0 %v291
    %407 = vmatpush.bf16.msra.mxu0 %v285
    %408 = vmatpush.bf16.msra.mxu0 %v279
    %409 = vmatmul.bf16.gmra.mxu0 %v131
    %v410 = vpop.f32.mrf.mxu0
    %v411 = vadd.f32 %v117, %v410
    %v412 = vpop.f32.mrf.mxu0
    %v413 = vadd.f32 %v117, %v412
    %414 = vdwg.mxu0
    %415 = vmatpush.bf16.msra.mxu0 %v322
    %416 = vmatpush.bf16.msra.mxu0 %v316
    %417 = vmatpush.bf16.msra.mxu0 %v310
    %418 = vmatpush.bf16.msra.mxu0 %v304
    %419 = vmatpush.bf16.msra.mxu0 %v298
    %420 = vmatpush.bf16.msra.mxu0 %v292
    %421 = vmatpush.bf16.msra.mxu0 %v286
    %422 = vmatpush.bf16.msra.mxu0 %v280
    %423 = vmatmul.bf16.gmra.mxu0 %v131
    %v424 = vpop.f32.mrf.mxu0
    %v425 = vadd.f32 %v118, %v424
    %v426 = vpop.f32.mrf.mxu0
    %v427 = vadd.f32 %v118, %v426
    %428 = vdwg.mxu0
    %429 = vmatpush.bf16.msra.mxu0 %v323
    %430 = vmatpush.bf16.msra.mxu0 %v317
    %431 = vmatpush.bf16.msra.mxu0 %v311
    %432 = vmatpush.bf16.msra.mxu0 %v305
    %433 = vmatpush.bf16.msra.mxu0 %v299
    %434 = vmatpush.bf16.msra.mxu0 %v293
    %435 = vmatpush.bf16.msra.mxu0 %v287
    %436 = vmatpush.bf16.msra.mxu0 %v281
    %437 = vmatmul.bf16.gmra.mxu0 %v131
    %v438 = vpop.f32.mrf.mxu0
    %v439 = vadd.f32 %v119, %v438
    %v440 = vpop.f32.mrf.mxu0
    %v441 = vadd.f32 %v119, %v440
    %442 = vdwg.mxu0
    %443 = vmatpush.bf16.msra.mxu0 %v324
    %444 = vmatpush.bf16.msra.mxu0 %v318
    %445 = vmatpush.bf16.msra.mxu0 %v312
    %446 = vmatpush.bf16.msra.mxu0 %v306
    %447 = vmatpush.bf16.msra.mxu0 %v300
    %448 = vmatpush.bf16.msra.mxu0 %v294
    %449 = vmatpush.bf16.msra.mxu0 %v288
    %450 = vmatpush.bf16.msra.mxu0 %v282
    %451 = vmatmul.bf16.gmra.mxu0 %v131
    %v452 = vpop.f32.mrf.mxu0
    %v453 = vadd.f32 %v120, %v452
    %v454 = vpop.f32.mrf.mxu0
    %v455 = vadd.f32 %v120, %v454
    %456 = vdwg.mxu0
    %v457 = vmul.f32 %v383, 0.0625
    %v458 = vmul.f32 %v397, 0.0625
    %v459 = vmul.f32 %v385, 0.0625
    %v460 = vmul.f32 %v399, 0.0625
    %v461 = vpack.c.bf16 %v458, %v457
    %v462 = vpack.c.bf16 %v460, %v459
    %v463 = vpack.c.bf16 %v425, %v411
    %v464 = vpack.c.bf16 %v427, %v413
    %v465 = vpack.c.bf16 %v453, %v439
    %v466 = vpack.c.bf16 %v455, %v441
    %v467 = vlaneseq
    %v468 = vshrl.u32 %v467, 7
    %v469 = vlaneseq
    %v470 = vand.u32 %v469, 127
    %v472 = vunpack.c.l.b16 %v461
    %v473 = vunpack.c.h.b16 %v461
    %v474 = vpack.c.b16 %v472, %v472
    %v475 = vpack.c.b16 %v473, %v473
    %v479 = vunpack.c.l.b16 %v463
    %v480 = vunpack.c.h.b16 %v463
    %v481 = vpack.c.b16 %v479, %v479
    %v482 = vpack.c.b16 %v480, %v480
    %485 = vmatpush.bf16.xpose.msra.mxu0 0
    %486 = vmatpush.bf16.xpose.msra.mxu0 0
    %487 = vmatpush.bf16.xpose.msra.mxu0 0
    %488 = vmatpush.bf16.xpose.msra.mxu0 0
    %489 = vmatpush.bf16.xpose.msra.mxu0 0
    %490 = vmatpush.bf16.xpose.msra.mxu0 0
    %491 = vmatpush.bf16.xpose.msra.mxu0 0
    %492 = vmatpush.bf16.xpose.msra.mxu0 %v481
    %493 = vmatmul.bf16.gmra.mxu0 %v474
    %v494 = vpop.f32.mrf.mxu0
    %v495 = vadd.f32 0.0, %v494
    %v496 = vpop.f32.mrf.mxu0
    %497 = vdwg.mxu0
    %498 = vmatpush.bf16.xpose.msra.mxu0 0
    %499 = vmatpush.bf16.xpose.msra.mxu0 0
    %500 = vmatpush.bf16.xpose.msra.mxu0 0
    %501 = vmatpush.bf16.xpose.msra.mxu0 0
    %502 = vmatpush.bf16.xpose.msra.mxu0 0
    %503 = vmatpush.bf16.xpose.msra.mxu0 0
    %504 = vmatpush.bf16.xpose.msra.mxu0 0
    %505 = vmatpush.bf16.xpose.msra.mxu0 %v482
    %506 = vmatmul.bf16.gmra.mxu0 %v475
    %v507 = vpop.f32.mrf.mxu0
    %v508 = vadd.f32 %v495, %v507
    %v509 = vpop.f32.mrf.mxu0
    %510 = vdwg.mxu0
    %v512 = vunpack.c.l.b16 %v462
    %v513 = vunpack.c.h.b16 %v462
    %v514 = vpack.c.b16 %v512, %v512
    %v515 = vpack.c.b16 %v513, %v513
    %v519 = vunpack.c.l.b16 %v464
    %v520 = vunpack.c.h.b16 %v464
    %v521 = vpack.c.b16 %v519, %v519
    %v522 = vpack.c.b16 %v520, %v520
    %525 = vmatpush.bf16.xpose.msra.mxu0 0
    %526 = vmatpush.bf16.xpose.msra.mxu0 0
    %527 = vmatpush.bf16.xpose.msra.mxu0 0
    %528 = vmatpush.bf16.xpose.msra.mxu0 0
    %529 = vmatpush.bf16.xpose.msra.mxu0 0
    %530 = vmatpush.bf16.xpose.msra.mxu0 0
    %531 = vmatpush.bf16.xpose.msra.mxu0 0
    %532 = vmatpush.bf16.xpose.msra.mxu0 %v521
    %533 = vmatmul.bf16.gmra.mxu0 %v514
    %v534 = vpop.f32.mrf.mxu0
    %v535 = vadd.f32 0.0, %v534
    %v536 = vpop.f32.mrf.mxu0
    %537 = vdwg.mxu0
    %538 = vmatpush.bf16.xpose.msra.mxu0 0
    %539 = vmatpush.bf16.xpose.msra.mxu0 0
    %540 = vmatpush.bf16.xpose.msra.mxu0 0
    %541 = vmatpush.bf16.xpose.msra.mxu0 0
    %542 = vmatpush.bf16.xpose.msra.mxu0 0
    %543 = vmatpush.bf16.xpose.msra.mxu0 0
    %544 = vmatpush.bf16.xpose.msra.mxu0 0
    %545 = vmatpush.bf16.xpose.msra.mxu0 %v522
    %546 = vmatmul.bf16.gmra.mxu0 %v515
    %v547 = vpop.f32.mrf.mxu0
    %v548 = vadd.f32 %v535, %v547
    %v549 = vpop.f32.mrf.mxu0
    %550 = vdwg.mxu0
    %vm551 = vcmp.le.s32.totalorder %v470, %v468
    %v552 = vsel %vm551, 1, 0
    %vm553 = vcmp.eq.s32.totalorder %v552, 1
    %v554 = vsel %vm553, %v508, -inf
    %v555 = vsel %vm553, %v548, -inf
    %vm556 = vcmask 64512
    %v557 = vsel %vm556, %v554, -inf
    %558 = vmax.xlane.f32.xlu0 %v557
    %v559 = vpop.xlane.xlu0 %558
    %v560 = vsel %vm556, %v555, -inf
    %561 = vmax.xlane.f32.xlu0 %v560
    %v562 = vpop.xlane.xlu0 %561
    %v563 = vsub.f32 %v554, %v559
    %v564 = vsub.f32 %v555, %v562
    %v565 = vmul.f32 %v563, 1.442695
    %v566 = vpow.pop %v565
    %v567 = vmul.f32 %v564, 1.442695
    %v568 = vpow.pop %v567
    %v569 = vsel %vm556, %v566, 0.0
    %570 = vadd.xlane.f32.xlu0 %v569
    %v571 = vpop.xlane.xlu0 %570
    %v572 = vsel %vm556, %v568, 0.0
    %573 = vadd.xlane.f32.xlu0 %v572
    %v574 = vpop.xlane.xlu0 %573
    %v575 = vpack.c.bf16 %v566, %v566
    %v576 = vpack.c.bf16 %v568, %v568
    %v578 = vunpack.c.l.b16 %v465
    %v579 = vunpack.c.h.b16 %v465
    %v580 = vpack.c.b16 %v578, %v578
    %v581 = vpack.c.b16 %v579, %v579
    %v583 = vsel %vm556, %v575, 0
    %vm585 = vcmask 1043456
    %v587 = vsel %vm585, %v580, 0
    %v590 = vsel %vm585, %v581, 0
    %592 = vmatpush.bf16.msra.mxu0 0
    %593 = vmatpush.bf16.msra.mxu0 0
    %594 = vmatpush.bf16.msra.mxu0 0
    %595 = vmatpush.bf16.msra.mxu0 0
    %596 = vmatpush.bf16.msra.mxu0 0
    %597 = vmatpush.bf16.msra.mxu0 0
    %598 = vmatpush.bf16.msra.mxu0 0
    %599 = vmatpush.bf16.msra.mxu0 %v587
    %600 = vmatmul.bf16.gmra.mxu0 %v583
    %v601 = vpop.f32.mrf.mxu0
    %v602 = vadd.f32 0.0, %v601
    %v603 = vpop.f32.mrf.mxu0
    %604 = vdwg.mxu0
    %605 = vmatpush.bf16.msra.mxu0 0
    %606 = vmatpush.bf16.msra.mxu0 0
    %607 = vmatpush.bf16.msra.mxu0 0
    %608 = vmatpush.bf16.msra.mxu0 0
    %609 = vmatpush.bf16.msra.mxu0 0
    %610 = vmatpush.bf16.msra.mxu0 0
    %611 = vmatpush.bf16.msra.mxu0 0
    %612 = vmatpush.bf16.msra.mxu0 %v590
    %613 = vmatmul.bf16.gmra.mxu0 %v583
    %v614 = vpop.f32.mrf.mxu0
    %v615 = vadd.f32 0.0, %v614
    %v616 = vpop.f32.mrf.mxu0
    %617 = vdwg.mxu0
    %v619 = vunpack.c.l.b16 %v466
    %v620 = vunpack.c.h.b16 %v466
    %v621 = vpack.c.b16 %v619, %v619
    %v622 = vpack.c.b16 %v620, %v620
    %v624 = vsel %vm556, %v576, 0
    %v627 = vsel %vm585, %v621, 0
    %v630 = vsel %vm585, %v622, 0
    %632 = vmatpush.bf16.msra.mxu0 0
    %633 = vmatpush.bf16.msra.mxu0 0
    %634 = vmatpush.bf16.msra.mxu0 0
    %635 = vmatpush.bf16.msra.mxu0 0
    %636 = vmatpush.bf16.msra.mxu0 0
    %637 = vmatpush.bf16.msra.mxu0 0
    %638 = vmatpush.bf16.msra.mxu0 0
    %639 = vmatpush.bf16.msra.mxu0 %v627
    %640 = vmatmul.bf16.gmra.mxu0 %v624
    %v641 = vpop.f32.mrf.mxu0
    %v642 = vadd.f32 0.0, %v641
    %v643 = vpop.f32.mrf.mxu0
    %644 = vdwg.mxu0
    %645 = vmatpush.bf16.msra.mxu0 0
    %646 = vmatpush.bf16.msra.mxu0 0
    %647 = vmatpush.bf16.msra.mxu0 0
    %648 = vmatpush.bf16.msra.mxu0 0
    %649 = vmatpush.bf16.msra.mxu0 0
    %650 = vmatpush.bf16.msra.mxu0 0
    %651 = vmatpush.bf16.msra.mxu0 0
    %652 = vmatpush.bf16.msra.mxu0 %v630
    %653 = vmatmul.bf16.gmra.mxu0 %v624
    %v654 = vpop.f32.mrf.mxu0
    %v655 = vadd.f32 0.0, %v654
    %v656 = vpop.f32.mrf.mxu0
    %657 = vdwg.mxu0
    %v658 = vrcp.pop %v571
    %v659 = vmul.f32 %v571, %v658
    %v660 = vsub.f32 1.0, %v659
    %v661 = vmul.f32 %v658, %v660
    %v662 = vadd.f32 %v658, %v661
    %vm663 = vweird.f32 %v571
    %vm664 = vweird.f32 %v658
    %vm665 = vmor %vm663, %vm664
    %v666 = vsel %vm665, %v658, %v662
    %v667 = vand.u32 2147483647, %v571
    %vm668 = vcmp.eq.f32.partialorder %v667, 8.507059e+37
    %v669 = vand.u32 %v571, 2147483648
    %v670 = vor.u32 1.1754944e-38, %v669
    %v671 = vsel %vm668, %v670, %v666
    %v672 = vmul.f32 1.0, %v671
    %v673 = vrcp.pop %v574
    %v674 = vmul.f32 %v574, %v673
    %v675 = vsub.f32 1.0, %v674
    %v676 = vmul.f32 %v673, %v675
    %v677 = vadd.f32 %v673, %v676
    %vm678 = vweird.f32 %v574
    %vm679 = vweird.f32 %v673
    %vm680 = vmor %vm678, %vm679
    %v681 = vsel %vm680, %v673, %v677
    %v682 = vand.u32 2147483647, %v574
    %vm683 = vcmp.eq.f32.partialorder %v682, 8.507059e+37
    %v684 = vand.u32 %v574, 2147483648
    %v685 = vor.u32 1.1754944e-38, %v684
    %v686 = vsel %vm683, %v685, %v681
    %v687 = vmul.f32 1.0, %v686
    %v688 = vmul.f32 %v602, %v672
    %v689 = vmul.f32 %v615, %v672
    %v690 = vmul.f32 %v642, %v687
    %v691 = vmul.f32 %v655, %v687
    %692 = vst [vmem:[#allocation8] sm:$0xff] %v688
    %693 = vst [vmem:[#allocation8 + $0x8] sm:$0xff] %v689
    %694 = vst [vmem:[#allocation8 + $0x10] sm:$0xff] %v690
    %695 = vst [vmem:[#allocation8 + $0x18] sm:$0xff] %v691
    // Predicated region
    $region26: #{self_attention.1} parent=1 // pred_check
      _
    $region27: #{self_attention.1} parent=1 // pred_check_branch
      %697 = sbr.rel (0) target = $region29
    $region28: #{self_attention.1} parent=1 // pred_region
      %699 = vsyncadd [#allocation4], 0
      %s700 = sshll.u32 [#allocation8], 4
      %s701 = int_to_ptr.vmem [resolvable:$true] %s700
      %s702 = sshll.u32 %s3, 4
      %s703 = int_to_ptr.hbm [resolvable:$true] %s702
      %708 = dma.vmem_to_hbm [thread:$0]  %s701, 512, %s703, [#allocation4], 256, 256, 16
    $region29: #{self_attention.1} parent=1 // pred_fallthru
      _
    // Predicated region
    $region30: #{self_attention.1} parent=1 // pred_check
      _
    $region31: #{self_attention.1} parent=1 // pred_check_branch
      %710 = sbr.rel (0) target = $region33
    $region32: #{self_attention.1} parent=1 // pred_region
      %712 = dma.done [#allocation4], 512
    $region33: #{self_attention.1} parent=1 // pred_fallthru
      _
    %713 = vsyncpa [#allocation3], 1
    %714 = vsyncpa [#allocation6], 1
    %715 = vsyncpa [#allocation4], 1

</llo_original>
